<compile_context>
chip_gen: v5e
topology: v5e:2x2
jax: 0.10.0
libtpu: 0.0.40
codegen_flags: <defaults>
</compile_context>

<pallas_src>
import functools
import string

import jax
import jax.numpy as jnp
from jax import lax
from jax.experimental import pallas as pl
from jax.experimental.pallas import tpu as pltpu

allowed_characters = string.ascii_letters + " .,;'" + "_"
n_letters = len(allowed_characters)  # 58


# ----------------------------------------------------------------------------
# Pallas kernel: index gather + unrolled recurrence + linear + log-softmax.
# grid=() -- everything (a few tens of KiB) is resident in VMEM.
# ----------------------------------------------------------------------------
def char_rnn_kernel(len_ref, idx_ref, w_ih_ref, w_hh_ref, w_ho_ref, b_out_ref,
                    out_ref, xg_ref, *, batch):
    S_max = idx_ref.shape[0]           # bucketed (static) sequence length
    B_pad, _ = out_ref.shape           # padded batch (multiple of 8 sublanes)
    seq_len = len_ref[0]               # true length (dynamic), <= S_max

    # --- Gather phase: x_proj[t, b] = (W_ih^T + b_ih + b_hh)[idx[t, b]]. -----
    # One dynamic single-row VMEM read per (t, b); replaces the one-hot matmul
    # and its HBM->VMEM DMA.  Independent of the recurrence, so the scheduler
    # can hide it before the serial chain starts.
    if batch < B_pad:
        xg_ref[...] = jnp.zeros_like(xg_ref)       # keep padded rows defined
    for t in range(S_max):
        for b in range(batch):
            r = t * B_pad + b
            xg_ref[r:r + 1, :] = w_ih_ref[pl.ds(idx_ref[t, b], 1), :]

    w_hh = w_hh_ref[...]                            # (H_pad, H_pad)

    # --- Serial recurrence, fully unrolled over the bucket. ------------------
    # h0 == 0, so step 0 needs no h @ W_hh matmul.  Steps past the true length
    # keep h unchanged so one compile covers every length in the bucket.
    h = jnp.tanh(xg_ref[0:B_pad, :])
    for t in range(1, S_max):
        h_new = jnp.tanh(xg_ref[t * B_pad:(t + 1) * B_pad, :]
                         + jnp.dot(h, w_hh, preferred_element_type=jnp.float32))
        h = jnp.where(t < seq_len, h_new, h)

    # --- h2o linear + LogSoftmax(dim=1). -------------------------------------
    # Padded classes carry a -1e30 bias (folded in prepare_params), so no
    # iota/where mask is needed and exp underflows cleanly to 0.
    logits = (jnp.dot(h, w_ho_ref[...], preferred_element_type=jnp.float32)
              + b_out_ref[...])
    m = jnp.max(logits, axis=1, keepdims=True)
    lse = jnp.log(jnp.sum(jnp.exp(logits - m), axis=1, keepdims=True)) + m
    out_ref[...] = logits - lse


def _round_up(n, m):
    return ((n + m - 1) // m) * m


# ----------------------------------------------------------------------------
# One-time weight preparation (hoisted out of the per-call path; cache it).
# ----------------------------------------------------------------------------
def prepare_params(params):
    w_ih, w_hh, b_ih, b_hh, w_ho, b_ho = params
    H, I = w_ih.shape
    O = w_ho.shape[0]
    I_pad = _round_up(I, 8)       # gather-table rows: sublane-align only
    H_pad = _round_up(H, 128)
    O_pad = _round_up(O, 128)

    # Row-gather table: W_ih^T with the combined RNN bias folded into each
    # row, so a gathered row IS the full per-token pre-activation contribution.
    w_ih_g = jnp.pad(jnp.transpose(w_ih) + (b_ih + b_hh)[None, :],
                     ((0, I_pad - I), (0, H_pad - H)))
    w_hh_t = jnp.pad(jnp.transpose(w_hh), ((0, H_pad - H), (0, H_pad - H)))
    w_ho_t = jnp.pad(jnp.transpose(w_ho), ((0, H_pad - H), (0, O_pad - O)))
    # Output bias with the class mask folded in: padded classes get a large
    # negative finite constant instead of an in-kernel iota/where mask.
    b_out = jnp.full((1, O_pad), -1e30, jnp.float32).at[0, :O].set(b_ho)

    return {"w_ih_g": w_ih_g, "w_hh_t": w_hh_t, "w_ho_t": w_ho_t,
            "b_out": b_out, "sizes": (I, H, O)}


# ----------------------------------------------------------------------------
# Forward wrappers.
# ----------------------------------------------------------------------------
def char_rnn_forward_from_indices(idx, seq_len, prepared):
    """Primary path.  idx: (S_bucket, B) int32 letter indices (entries past
    seq_len are ignored, pad with 0).  Returns (B, O) log-probabilities."""
    S_max, B = idx.shape
    _, _, O = prepared["sizes"]
    H_pad = prepared["w_hh_t"].shape[0]
    O_pad = prepared["w_ho_t"].shape[1]
    B_pad = max(8, _round_up(B, 8))

    smem = pl.BlockSpec(memory_space=pltpu.MemorySpace.SMEM)
    vmem = pl.BlockSpec(memory_space=pltpu.MemorySpace.VMEM)

    out_padded = pl.pallas_call(
        functools.partial(char_rnn_kernel, batch=B),
        out_shape=jax.ShapeDtypeStruct((B_pad, O_pad), jnp.float32),
        in_specs=[smem, smem, vmem, vmem, vmem, vmem],
        out_specs=vmem,
        scratch_shapes=[pltpu.VMEM((S_max * B_pad, H_pad), jnp.float32)],
    )(jnp.asarray(seq_len, jnp.int32).reshape(1),
      idx.astype(jnp.int32),
      prepared["w_ih_g"], prepared["w_hh_t"], prepared["w_ho_t"],
      prepared["b_out"])

    # Lane-dense (8, 128) output stays in the kernel; slice real rows/classes.
    return out_padded[:B, :O]


def char_rnn_forward(line_tensor, prepared, s_bucket=None):
    """Interface-compatible shim for a one-hot (seq, batch, n_letters) line
    tensor (as produced by lineToTensor); converts to indices and dispatches."""
    S, B, _ = line_tensor.shape
    if s_bucket is None:
        s_bucket = _round_up(S, 8)
    idx = jnp.argmax(line_tensor, axis=-1).astype(jnp.int32)
    idx = jnp.pad(idx, ((0, s_bucket - S), (0, 0)))
    return char_rnn_forward_from_indices(idx, S, prepared)


# ----------------------------------------------------------------------------
# Pure-JAX reference (mirrors PyTorch CharRNN.forward exactly, f32, full prec).
# ----------------------------------------------------------------------------
def char_rnn_reference(x, params):
    w_ih, w_hh, b_ih, b_hh, w_ho, b_ho = params
    S, B, _ = x.shape
    H = w_hh.shape[0]
    hp = lax.Precision.HIGHEST
    h = jnp.zeros((B, H), jnp.float32)
    for t in range(S):
        h = jnp.tanh(jnp.dot(x[t], w_ih.T, precision=hp) + b_ih
                     + jnp.dot(h, w_hh.T, precision=hp) + b_hh)
    logits = jnp.dot(h, w_ho.T, precision=hp) + b_ho
    return jax.nn.log_softmax(logits, axis=1)


def init_params(key, input_size, hidden_size, output_size):
    """Deterministic init matching PyTorch default U(-1/sqrt(fan), 1/sqrt(fan))."""
    ks = jax.random.split(key, 6)
    k = 1.0 / jnp.sqrt(hidden_size)
    w_ih = jax.random.uniform(ks[0], (hidden_size, input_size), jnp.float32, -k, k)
    w_hh = jax.random.uniform(ks[1], (hidden_size, hidden_size), jnp.float32, -k, k)
    b_ih = jax.random.uniform(ks[2], (hidden_size,), jnp.float32, -k, k)
    b_hh = jax.random.uniform(ks[3], (hidden_size,), jnp.float32, -k, k)
    w_ho = jax.random.uniform(ks[4], (output_size, hidden_size), jnp.float32, -k, k)
    b_ho = jax.random.uniform(ks[5], (output_size,), jnp.float32, -k, k)
    return (w_ih, w_hh, b_ih, b_hh, w_ho, b_ho)


if __name__ == "__main__":
    key = jax.random.PRNGKey(0)
    k_idx, k_params = jax.random.split(key)

    # Small shapes consistent with the module: n_hidden=128, 18 name classes,
    # a 6-letter "name" with batch=2, sequence bucketed to 8.
    seq_len, batch, hidden_size, output_size = 6, 2, 128, 18
    S_BUCKET = 8

    idx_real = jax.random.randint(k_idx, (seq_len, batch), 0, n_letters,
                                  dtype=jnp.int32)
    idx_bucket = jnp.zeros((S_BUCKET, batch), jnp.int32).at[:seq_len, :].set(idx_real)

    params = init_params(k_params, n_letters, hidden_size, output_size)
    prepared = prepare_params(params)      # one-time; reused across calls

    out = char_rnn_forward_from_indices(idx_bucket, seq_len, prepared)
    out = jax.block_until_ready(out)

    # Reference on the real-length one-hot line tensor (PyTorch semantics).
    x = jax.nn.one_hot(idx_real, n_letters, dtype=jnp.float32)
    ref = char_rnn_reference(x, params)

    assert out.shape == (batch, output_size)
    assert bool(jnp.allclose(out, ref, atol=1e-4, rtol=1e-4)), (
        float(jnp.max(jnp.abs(out - ref))))

    print("KERNEL_OK")
</pallas_src>

<mosaic_0001>
module attributes {stable_mosaic.version = 11 : i64} {
  func.func @char_rnn_kernel(%arg0: memref<1xi32, #tpu.memory_space<smem>>, %arg1: memref<8x2xi32, #tpu.memory_space<smem>>, %arg2: memref<64x128xf32, #tpu.memory_space<vmem>>, %arg3: memref<128x128xf32, #tpu.memory_space<vmem>>, %arg4: memref<128x128xf32, #tpu.memory_space<vmem>>, %arg5: memref<1x128xf32, #tpu.memory_space<vmem>>, %arg6: memref<8x128xf32, #tpu.memory_space<vmem>>, %arg7: memref<64x128xf32, #tpu.memory_space<vmem>>) attributes {dimension_semantics = [], scalar_prefetch = 0 : i64, scratch_operands = 1 : i64, tpu.core_type = #tpu.core_type<tc>} {
    %c0 = arith.constant 0 : index
    %0 = memref.load %arg0[%c0] : memref<1xi32, #tpu.memory_space<smem>>
    %cst = arith.constant 0.000000e+00 : f32
    %1 = vector.broadcast %cst : f32 to vector<64x128xf32>
    %c0_0 = arith.constant 0 : index
    %c0_1 = arith.constant 0 : index
    %2 = vector.load %arg7[%c0_0, %c0_1] : memref<64x128xf32, #tpu.memory_space<vmem>>, vector<64x128xf32>
    tpu.vector_store %arg7[%c0_0, %c0_1], %1 {strides = array<i32>} : memref<64x128xf32, #tpu.memory_space<vmem>>, vector<64x128xf32>,
    %c0_2 = arith.constant 0 : index
    %c0_3 = arith.constant 0 : index
    %3 = memref.load %arg1[%c0_2, %c0_3] : memref<8x2xi32, #tpu.memory_space<smem>>
    %4 = arith.index_cast %3 : i32 to index
    %c0_4 = arith.constant 0 : index
    %5 = vector.load %arg2[%4, %c0_4] : memref<64x128xf32, #tpu.memory_space<vmem>>, vector<1x128xf32>
    %c0_5 = arith.constant 0 : index
    %c0_6 = arith.constant 0 : index
    %6 = vector.load %arg7[%c0_5, %c0_6] : memref<64x128xf32, #tpu.memory_space<vmem>>, vector<1x128xf32>
    tpu.vector_store %arg7[%c0_5, %c0_6], %5 {strides = array<i32>} : memref<64x128xf32, #tpu.memory_space<vmem>>, vector<1x128xf32>,
    %c0_7 = arith.constant 0 : index
    %c1 = arith.constant 1 : index
    %7 = memref.load %arg1[%c0_7, %c1] : memref<8x2xi32, #tpu.memory_space<smem>>
    %8 = arith.index_cast %7 : i32 to index
    %c0_8 = arith.constant 0 : index
    %9 = vector.load %arg2[%8, %c0_8] : memref<64x128xf32, #tpu.memory_space<vmem>>, vector<1x128xf32>
    %c1_9 = arith.constant 1 : index
    %c0_10 = arith.constant 0 : index
    %10 = vector.load %arg7[%c1_9, %c0_10] : memref<64x128xf32, #tpu.memory_space<vmem>>, vector<1x128xf32>
    tpu.vector_store %arg7[%c1_9, %c0_10], %9 {strides = array<i32>} : memref<64x128xf32, #tpu.memory_space<vmem>>, vector<1x128xf32>,
    %c1_11 = arith.constant 1 : index
    %c0_12 = arith.constant 0 : index
    %11 = memref.load %arg1[%c1_11, %c0_12] : memref<8x2xi32, #tpu.memory_space<smem>>
    %12 = arith.index_cast %11 : i32 to index
    %c0_13 = arith.constant 0 : index
    %13 = vector.load %arg2[%12, %c0_13] : memref<64x128xf32, #tpu.memory_space<vmem>>, vector<1x128xf32>
    %c8 = arith.constant 8 : index
    %c0_14 = arith.constant 0 : index
    %14 = vector.load %arg7[%c8, %c0_14] : memref<64x128xf32, #tpu.memory_space<vmem>>, vector<1x128xf32>
    tpu.vector_store %arg7[%c8, %c0_14], %13 {strides = array<i32>} : memref<64x128xf32, #tpu.memory_space<vmem>>, vector<1x128xf32>,
    %c1_15 = arith.constant 1 : index
    %c1_16 = arith.constant 1 : index
    %15 = memref.load %arg1[%c1_15, %c1_16] : memref<8x2xi32, #tpu.memory_space<smem>>
    %16 = arith.index_cast %15 : i32 to index
    %c0_17 = arith.constant 0 : index
    %17 = vector.load %arg2[%16, %c0_17] : memref<64x128xf32, #tpu.memory_space<vmem>>, vector<1x128xf32>
    %c9 = arith.constant 9 : index
    %c0_18 = arith.constant 0 : index
    %18 = vector.load %arg7[%c9, %c0_18] : memref<64x128xf32, #tpu.memory_space<vmem>>, vector<1x128xf32>
    tpu.vector_store %arg7[%c9, %c0_18], %17 {strides = array<i32>} : memref<64x128xf32, #tpu.memory_space<vmem>>, vector<1x128xf32>,
    %c2 = arith.constant 2 : index
    %c0_19 = arith.constant 0 : index
    %19 = memref.load %arg1[%c2, %c0_19] : memref<8x2xi32, #tpu.memory_space<smem>>
    %20 = arith.index_cast %19 : i32 to index
    %c0_20 = arith.constant 0 : index
    %21 = vector.load %arg2[%20, %c0_20] : memref<64x128xf32, #tpu.memory_space<vmem>>, vector<1x128xf32>
    %c16 = arith.constant 16 : index
    %c0_21 = arith.constant 0 : index
    %22 = vector.load %arg7[%c16, %c0_21] : memref<64x128xf32, #tpu.memory_space<vmem>>, vector<1x128xf32>
    tpu.vector_store %arg7[%c16, %c0_21], %21 {strides = array<i32>} : memref<64x128xf32, #tpu.memory_space<vmem>>, vector<1x128xf32>,
    %c2_22 = arith.constant 2 : index
    %c1_23 = arith.constant 1 : index
    %23 = memref.load %arg1[%c2_22, %c1_23] : memref<8x2xi32, #tpu.memory_space<smem>>
    %24 = arith.index_cast %23 : i32 to index
    %c0_24 = arith.constant 0 : index
    %25 = vector.load %arg2[%24, %c0_24] : memref<64x128xf32, #tpu.memory_space<vmem>>, vector<1x128xf32>
    %c17 = arith.constant 17 : index
    %c0_25 = arith.constant 0 : index
    %26 = vector.load %arg7[%c17, %c0_25] : memref<64x128xf32, #tpu.memory_space<vmem>>, vector<1x128xf32>
    tpu.vector_store %arg7[%c17, %c0_25], %25 {strides = array<i32>} : memref<64x128xf32, #tpu.memory_space<vmem>>, vector<1x128xf32>,
    %c3 = arith.constant 3 : index
    %c0_26 = arith.constant 0 : index
    %27 = memref.load %arg1[%c3, %c0_26] : memref<8x2xi32, #tpu.memory_space<smem>>
    %28 = arith.index_cast %27 : i32 to index
    %c0_27 = arith.constant 0 : index
    %29 = vector.load %arg2[%28, %c0_27] : memref<64x128xf32, #tpu.memory_space<vmem>>, vector<1x128xf32>
    %c24 = arith.constant 24 : index
    %c0_28 = arith.constant 0 : index
    %30 = vector.load %arg7[%c24, %c0_28] : memref<64x128xf32, #tpu.memory_space<vmem>>, vector<1x128xf32>
    tpu.vector_store %arg7[%c24, %c0_28], %29 {strides = array<i32>} : memref<64x128xf32, #tpu.memory_space<vmem>>, vector<1x128xf32>,
    %c3_29 = arith.constant 3 : index
    %c1_30 = arith.constant 1 : index
    %31 = memref.load %arg1[%c3_29, %c1_30] : memref<8x2xi32, #tpu.memory_space<smem>>
    %32 = arith.index_cast %31 : i32 to index
    %c0_31 = arith.constant 0 : index
    %33 = vector.load %arg2[%32, %c0_31] : memref<64x128xf32, #tpu.memory_space<vmem>>, vector<1x128xf32>
    %c25 = arith.constant 25 : index
    %c0_32 = arith.constant 0 : index
    %34 = vector.load %arg7[%c25, %c0_32] : memref<64x128xf32, #tpu.memory_space<vmem>>, vector<1x128xf32>
    tpu.vector_store %arg7[%c25, %c0_32], %33 {strides = array<i32>} : memref<64x128xf32, #tpu.memory_space<vmem>>, vector<1x128xf32>,
    %c4 = arith.constant 4 : index
    %c0_33 = arith.constant 0 : index
    %35 = memref.load %arg1[%c4, %c0_33] : memref<8x2xi32, #tpu.memory_space<smem>>
    %36 = arith.index_cast %35 : i32 to index
    %c0_34 = arith.constant 0 : index
    %37 = vector.load %arg2[%36, %c0_34] : memref<64x128xf32, #tpu.memory_space<vmem>>, vector<1x128xf32>
    %c32 = arith.constant 32 : index
    %c0_35 = arith.constant 0 : index
    %38 = vector.load %arg7[%c32, %c0_35] : memref<64x128xf32, #tpu.memory_space<vmem>>, vector<1x128xf32>
    tpu.vector_store %arg7[%c32, %c0_35], %37 {strides = array<i32>} : memref<64x128xf32, #tpu.memory_space<vmem>>, vector<1x128xf32>,
    %c4_36 = arith.constant 4 : index
    %c1_37 = arith.constant 1 : index
    %39 = memref.load %arg1[%c4_36, %c1_37] : memref<8x2xi32, #tpu.memory_space<smem>>
    %40 = arith.index_cast %39 : i32 to index
    %c0_38 = arith.constant 0 : index
    %41 = vector.load %arg2[%40, %c0_38] : memref<64x128xf32, #tpu.memory_space<vmem>>, vector<1x128xf32>
    %c33 = arith.constant 33 : index
    %c0_39 = arith.constant 0 : index
    %42 = vector.load %arg7[%c33, %c0_39] : memref<64x128xf32, #tpu.memory_space<vmem>>, vector<1x128xf32>
    tpu.vector_store %arg7[%c33, %c0_39], %41 {strides = array<i32>} : memref<64x128xf32, #tpu.memory_space<vmem>>, vector<1x128xf32>,
    %c5 = arith.constant 5 : index
    %c0_40 = arith.constant 0 : index
    %43 = memref.load %arg1[%c5, %c0_40] : memref<8x2xi32, #tpu.memory_space<smem>>
    %44 = arith.index_cast %43 : i32 to index
    %c0_41 = arith.constant 0 : index
    %45 = vector.load %arg2[%44, %c0_41] : memref<64x128xf32, #tpu.memory_space<vmem>>, vector<1x128xf32>
    %c40 = arith.constant 40 : index
    %c0_42 = arith.constant 0 : index
    %46 = vector.load %arg7[%c40, %c0_42] : memref<64x128xf32, #tpu.memory_space<vmem>>, vector<1x128xf32>
    tpu.vector_store %arg7[%c40, %c0_42], %45 {strides = array<i32>} : memref<64x128xf32, #tpu.memory_space<vmem>>, vector<1x128xf32>,
    %c5_43 = arith.constant 5 : index
    %c1_44 = arith.constant 1 : index
    %47 = memref.load %arg1[%c5_43, %c1_44] : memref<8x2xi32, #tpu.memory_space<smem>>
    %48 = arith.index_cast %47 : i32 to index
    %c0_45 = arith.constant 0 : index
    %49 = vector.load %arg2[%48, %c0_45] : memref<64x128xf32, #tpu.memory_space<vmem>>, vector<1x128xf32>
    %c41 = arith.constant 41 : index
    %c0_46 = arith.constant 0 : index
    %50 = vector.load %arg7[%c41, %c0_46] : memref<64x128xf32, #tpu.memory_space<vmem>>, vector<1x128xf32>
    tpu.vector_store %arg7[%c41, %c0_46], %49 {strides = array<i32>} : memref<64x128xf32, #tpu.memory_space<vmem>>, vector<1x128xf32>,
    %c6 = arith.constant 6 : index
    %c0_47 = arith.constant 0 : index
    %51 = memref.load %arg1[%c6, %c0_47] : memref<8x2xi32, #tpu.memory_space<smem>>
    %52 = arith.index_cast %51 : i32 to index
    %c0_48 = arith.constant 0 : index
    %53 = vector.load %arg2[%52, %c0_48] : memref<64x128xf32, #tpu.memory_space<vmem>>, vector<1x128xf32>
    %c48 = arith.constant 48 : index
    %c0_49 = arith.constant 0 : index
    %54 = vector.load %arg7[%c48, %c0_49] : memref<64x128xf32, #tpu.memory_space<vmem>>, vector<1x128xf32>
    tpu.vector_store %arg7[%c48, %c0_49], %53 {strides = array<i32>} : memref<64x128xf32, #tpu.memory_space<vmem>>, vector<1x128xf32>,
    %c6_50 = arith.constant 6 : index
    %c1_51 = arith.constant 1 : index
    %55 = memref.load %arg1[%c6_50, %c1_51] : memref<8x2xi32, #tpu.memory_space<smem>>
    %56 = arith.index_cast %55 : i32 to index
    %c0_52 = arith.constant 0 : index
    %57 = vector.load %arg2[%56, %c0_52] : memref<64x128xf32, #tpu.memory_space<vmem>>, vector<1x128xf32>
    %c49 = arith.constant 49 : index
    %c0_53 = arith.constant 0 : index
    %58 = vector.load %arg7[%c49, %c0_53] : memref<64x128xf32, #tpu.memory_space<vmem>>, vector<1x128xf32>
    tpu.vector_store %arg7[%c49, %c0_53], %57 {strides = array<i32>} : memref<64x128xf32, #tpu.memory_space<vmem>>, vector<1x128xf32>,
    %c7 = arith.constant 7 : index
    %c0_54 = arith.constant 0 : index
    %59 = memref.load %arg1[%c7, %c0_54] : memref<8x2xi32, #tpu.memory_space<smem>>
    %60 = arith.index_cast %59 : i32 to index
    %c0_55 = arith.constant 0 : index
    %61 = vector.load %arg2[%60, %c0_55] : memref<64x128xf32, #tpu.memory_space<vmem>>, vector<1x128xf32>
    %c56 = arith.constant 56 : index
    %c0_56 = arith.constant 0 : index
    %62 = vector.load %arg7[%c56, %c0_56] : memref<64x128xf32, #tpu.memory_space<vmem>>, vector<1x128xf32>
    tpu.vector_store %arg7[%c56, %c0_56], %61 {strides = array<i32>} : memref<64x128xf32, #tpu.memory_space<vmem>>, vector<1x128xf32>,
    %c7_57 = arith.constant 7 : index
    %c1_58 = arith.constant 1 : index
    %63 = memref.load %arg1[%c7_57, %c1_58] : memref<8x2xi32, #tpu.memory_space<smem>>
    %64 = arith.index_cast %63 : i32 to index
    %c0_59 = arith.constant 0 : index
    %65 = vector.load %arg2[%64, %c0_59] : memref<64x128xf32, #tpu.memory_space<vmem>>, vector<1x128xf32>
    %c57 = arith.constant 57 : index
    %c0_60 = arith.constant 0 : index
    %66 = vector.load %arg7[%c57, %c0_60] : memref<64x128xf32, #tpu.memory_space<vmem>>, vector<1x128xf32>
    tpu.vector_store %arg7[%c57, %c0_60], %65 {strides = array<i32>} : memref<64x128xf32, #tpu.memory_space<vmem>>, vector<1x128xf32>,
    %c0_61 = arith.constant 0 : index
    %c0_62 = arith.constant 0 : index
    %67 = vector.load %arg3[%c0_61, %c0_62] : memref<128x128xf32, #tpu.memory_space<vmem>>, vector<128x128xf32>
    %c0_63 = arith.constant 0 : index
    %c0_64 = arith.constant 0 : index
    %68 = vector.load %arg7[%c0_63, %c0_64] : memref<64x128xf32, #tpu.memory_space<vmem>>, vector<8x128xf32>
    %69 = math.tanh %68 : vector<8x128xf32>
    %c8_65 = arith.constant 8 : index
    %c0_66 = arith.constant 0 : index
    %70 = vector.load %arg7[%c8_65, %c0_66] : memref<64x128xf32, #tpu.memory_space<vmem>>, vector<8x128xf32>
    %cst_67 = arith.constant dense<0.000000e+00> : vector<8x128xf32>
    %71 = tpu.matmul %69, %67, %cst_67 {dimension_numbers = #tpu.dot_dimension_numbers<[1], [0], [0], [1], [0, 0, 1, 1], [], []>} : vector<8x128xf32>, vector<128x128xf32>, vector<8x128xf32> -> vector<8x128xf32>
    %72 = arith.addf %70, %71 : vector<8x128xf32>
    %73 = math.tanh %72 : vector<8x128xf32>
    %c1_i32 = arith.constant 1 : i32
    %74 = arith.cmpi sgt, %0, %c1_i32 : i32
    %75 = arith.select %74, %73, %69 : vector<8x128xf32>
    %c16_68 = arith.constant 16 : index
    %c0_69 = arith.constant 0 : index
    %76 = vector.load %arg7[%c16_68, %c0_69] : memref<64x128xf32, #tpu.memory_space<vmem>>, vector<8x128xf32>
    %cst_70 = arith.constant dense<0.000000e+00> : vector<8x128xf32>
    %77 = tpu.matmul %75, %67, %cst_70 {dimension_numbers = #tpu.dot_dimension_numbers<[1], [0], [0], [1], [0, 0, 1, 1], [], []>} : vector<8x128xf32>, vector<128x128xf32>, vector<8x128xf32> -> vector<8x128xf32>
    %78 = arith.addf %76, %77 : vector<8x128xf32>
    %79 = math.tanh %78 : vector<8x128xf32>
    %c2_i32 = arith.constant 2 : i32
    %80 = arith.cmpi sgt, %0, %c2_i32 : i32
    %81 = arith.select %80, %79, %75 : vector<8x128xf32>
    %c24_71 = arith.constant 24 : index
    %c0_72 = arith.constant 0 : index
    %82 = vector.load %arg7[%c24_71, %c0_72] : memref<64x128xf32, #tpu.memory_space<vmem>>, vector<8x128xf32>
    %cst_73 = arith.constant dense<0.000000e+00> : vector<8x128xf32>
    %83 = tpu.matmul %81, %67, %cst_73 {dimension_numbers = #tpu.dot_dimension_numbers<[1], [0], [0], [1], [0, 0, 1, 1], [], []>} : vector<8x128xf32>, vector<128x128xf32>, vector<8x128xf32> -> vector<8x128xf32>
    %84 = arith.addf %82, %83 : vector<8x128xf32>
    %85 = math.tanh %84 : vector<8x128xf32>
    %c3_i32 = arith.constant 3 : i32
    %86 = arith.cmpi sgt, %0, %c3_i32 : i32
    %87 = arith.select %86, %85, %81 : vector<8x128xf32>
    %c32_74 = arith.constant 32 : index
    %c0_75 = arith.constant 0 : index
    %88 = vector.load %arg7[%c32_74, %c0_75] : memref<64x128xf32, #tpu.memory_space<vmem>>, vector<8x128xf32>
    %cst_76 = arith.constant dense<0.000000e+00> : vector<8x128xf32>
    %89 = tpu.matmul %87, %67, %cst_76 {dimension_numbers = #tpu.dot_dimension_numbers<[1], [0], [0], [1], [0, 0, 1, 1], [], []>} : vector<8x128xf32>, vector<128x128xf32>, vector<8x128xf32> -> vector<8x128xf32>
    %90 = arith.addf %88, %89 : vector<8x128xf32>
    %91 = math.tanh %90 : vector<8x128xf32>
    %c4_i32 = arith.constant 4 : i32
    %92 = arith.cmpi sgt, %0, %c4_i32 : i32
    %93 = arith.select %92, %91, %87 : vector<8x128xf32>
    %c40_77 = arith.constant 40 : index
    %c0_78 = arith.constant 0 : index
    %94 = vector.load %arg7[%c40_77, %c0_78] : memref<64x128xf32, #tpu.memory_space<vmem>>, vector<8x128xf32>
    %cst_79 = arith.constant dense<0.000000e+00> : vector<8x128xf32>
    %95 = tpu.matmul %93, %67, %cst_79 {dimension_numbers = #tpu.dot_dimension_numbers<[1], [0], [0], [1], [0, 0, 1, 1], [], []>} : vector<8x128xf32>, vector<128x128xf32>, vector<8x128xf32> -> vector<8x128xf32>
    %96 = arith.addf %94, %95 : vector<8x128xf32>
    %97 = math.tanh %96 : vector<8x128xf32>
    %c5_i32 = arith.constant 5 : i32
    %98 = arith.cmpi sgt, %0, %c5_i32 : i32
    %99 = arith.select %98, %97, %93 : vector<8x128xf32>
    %c48_80 = arith.constant 48 : index
    %c0_81 = arith.constant 0 : index
    %100 = vector.load %arg7[%c48_80, %c0_81] : memref<64x128xf32, #tpu.memory_space<vmem>>, vector<8x128xf32>
    %cst_82 = arith.constant dense<0.000000e+00> : vector<8x128xf32>
    %101 = tpu.matmul %99, %67, %cst_82 {dimension_numbers = #tpu.dot_dimension_numbers<[1], [0], [0], [1], [0, 0, 1, 1], [], []>} : vector<8x128xf32>, vector<128x128xf32>, vector<8x128xf32> -> vector<8x128xf32>
    %102 = arith.addf %100, %101 : vector<8x128xf32>
    %103 = math.tanh %102 : vector<8x128xf32>
    %c6_i32 = arith.constant 6 : i32
    %104 = arith.cmpi sgt, %0, %c6_i32 : i32
    %105 = arith.select %104, %103, %99 : vector<8x128xf32>
    %c56_83 = arith.constant 56 : index
    %c0_84 = arith.constant 0 : index
    %106 = vector.load %arg7[%c56_83, %c0_84] : memref<64x128xf32, #tpu.memory_space<vmem>>, vector<8x128xf32>
    %cst_85 = arith.constant dense<0.000000e+00> : vector<8x128xf32>
    %107 = tpu.matmul %105, %67, %cst_85 {dimension_numbers = #tpu.dot_dimension_numbers<[1], [0], [0], [1], [0, 0, 1, 1], [], []>} : vector<8x128xf32>, vector<128x128xf32>, vector<8x128xf32> -> vector<8x128xf32>
    %108 = arith.addf %106, %107 : vector<8x128xf32>
    %109 = math.tanh %108 : vector<8x128xf32>
    %c7_i32 = arith.constant 7 : i32
    %110 = arith.cmpi sgt, %0, %c7_i32 : i32
    %111 = arith.select %110, %109, %105 : vector<8x128xf32>
    %c0_86 = arith.constant 0 : index
    %c0_87 = arith.constant 0 : index
    %112 = vector.load %arg4[%c0_86, %c0_87] : memref<128x128xf32, #tpu.memory_space<vmem>>, vector<128x128xf32>
    %cst_88 = arith.constant dense<0.000000e+00> : vector<8x128xf32>
    %113 = tpu.matmul %111, %112, %cst_88 {dimension_numbers = #tpu.dot_dimension_numbers<[1], [0], [0], [1], [0, 0, 1, 1], [], []>} : vector<8x128xf32>, vector<128x128xf32>, vector<8x128xf32> -> vector<8x128xf32>
    %c0_89 = arith.constant 0 : index
    %c0_90 = arith.constant 0 : index
    %114 = vector.load %arg5[%c0_89, %c0_90] : memref<1x128xf32, #tpu.memory_space<vmem>>, vector<1x128xf32>
    %115 = vector.broadcast %114 : vector<1x128xf32> to vector<8x128xf32>
    %116 = arith.addf %113, %115 : vector<8x128xf32>
    %cst_91 = arith.constant dense<0xFF800000> : vector<8xf32>
    %117 = vector.multi_reduction <maximumf>, %116, %cst_91 [1] : vector<8x128xf32> to vector<8xf32>
    %118 = vector.shape_cast %117 : vector<8xf32> to vector<8x1xf32>
    %119 = vector.broadcast %118 : vector<8x1xf32> to vector<8x128xf32>
    %120 = arith.subf %116, %119 : vector<8x128xf32>
    %121 = math.exp %120 : vector<8x128xf32>
    %cst_92 = arith.constant dense<0.000000e+00> : vector<8xf32>
    %122 = vector.multi_reduction <add>, %121, %cst_92 [1] : vector<8x128xf32> to vector<8xf32>
    %123 = vector.shape_cast %122 : vector<8xf32> to vector<8x1xf32>
    %124 = math.log %123 : vector<8x1xf32>
    %125 = arith.addf %124, %118 : vector<8x1xf32>
    %126 = vector.broadcast %125 : vector<8x1xf32> to vector<8x128xf32>
    %127 = arith.subf %116, %126 : vector<8x128xf32>
    %c0_93 = arith.constant 0 : index
    %c0_94 = arith.constant 0 : index
    %128 = vector.load %arg6[%c0_93, %c0_94] : memref<8x128xf32, #tpu.memory_space<vmem>>, vector<8x128xf32>
    tpu.vector_store %arg6[%c0_93, %c0_94], %127 {strides = array<i32>} : memref<8x128xf32, #tpu.memory_space<vmem>>, vector<8x128xf32>,
    return
  }
}

</mosaic_0001>

<llo_original>
// kernel: tpu_custom_call.1
$region0: #{tpu_custom_call.1}
  #allocation0 [shape = 'u32[]', space=smem, size = 0x4, offset = 0x4, fixed_abs, tag = 'smem constant byte address 0x4 - core index']
  #allocation1 [shape = 'u32[72,128]{1,0:T(1,128)}', space=vmem, size = 0x9000, scoped, tag = 'internal scratch']
  #allocation2 [shape = 'f32[64,128]{1,0:T(8,128)}', space=vmem, size = 0x8000, scoped, tag = 'scratch operand']
  #allocation3 [shape = 's32[1]{0:T(128)S(6)}', space=smem, size = 0x200, scoped, tag = 'scoped memory for tpu_custom_call.1']
  %s0 = inlined_call_operand.<no memory space> [shape: s32[1], index: 0, kind: input, shape index: {}]
  %s1 = inlined_call_operand.vmem [shape: s32[8,2], index: 1, kind: input, shape index: {}]
  %s2 = inlined_call_operand.hbm [shape: f32[64,128], index: 2, kind: input, shape index: {}]
  %s3 = inlined_call_operand.hbm [shape: f32[128,128], index: 3, kind: input, shape index: {}]
  %s4 = inlined_call_operand.hbm [shape: f32[128,128], index: 4, kind: input, shape index: {}]
  %s5 = inlined_call_operand.vmem [shape: f32[1,128], index: 5, kind: input, shape index: {}]
  %s6 = inlined_call_operand.hbm [shape: f32[8,128], index: 6, kind: output, shape index: {}]
  %s7 = sld [smem:[#allocation0]]
  $region50: #{tpu_custom_call.1} parent=0
    _
  %s9 = ssub.s32 1, %s7
  %s10 = scalar_select 0, %s9, %s7
  %11 = sst [smem:[#allocation3]] %s0
  $region1: #{tpu_custom_call.1} parent=0
    #allocation4 [shape = 'u8[4096]{0}', space=smem, size = 0x1000, scoped, tag = 'input window, operand 1, single buffered']
    #allocation5 [shape = 's32[1]{0}', space=sflag, size = 0x4, scoped, tag = 'scoped memory for tpu_custom_call.1']
    #allocation6 [shape = 's32[1]{0}', space=sflag, size = 0x4, scoped, tag = 'scoped memory for tpu_custom_call.1']
    #allocation7 [shape = 's32[1]{0}', space=sflag, size = 0x4, scoped, tag = 'scoped memory for tpu_custom_call.1']
    #allocation8 [shape = 'u8[32768]{0}', space=vmem, size = 0x8000, scoped, tag = 'input window, operand 2, single buffered']
    #allocation9 [shape = 'u8[65536]{0}', space=vmem, size = 0x10000, scoped, tag = 'input window, operand 3, single buffered']
    #allocation10 [shape = 's32[1]{0}', space=sflag, size = 0x4, scoped, tag = 'scoped memory for tpu_custom_call.1']
    #allocation11 [shape = 'u8[65536]{0}', space=vmem, size = 0x10000, scoped, tag = 'input window, operand 4, single buffered']
    #allocation12 [shape = 'u8[4096]{0}', space=vmem, size = 0x1000, scoped, tag = 'output window, operand 0, single buffered']
    %12 = vsyncpa [#allocation7], 0
    %13 = vsyncpa [#allocation5], 0
    %14 = vsyncpa [#allocation10], 0
    %15 = vsyncpa [#allocation6], 0
    // Predicated region
    $region2: #{tpu_custom_call.1} parent=1 // pred_check
      _
    $region3: #{tpu_custom_call.1} parent=1 // pred_check_branch
      %17 = sbr.rel (0) target = $region5
    $region4: #{tpu_custom_call.1} parent=1 // pred_region
      _
    $region5: #{tpu_custom_call.1} parent=1 // pred_fallthru
      _
    // Predicated region
    $region6: #{tpu_custom_call.1} parent=1 // pred_check
      _
    $region7: #{tpu_custom_call.1} parent=1 // pred_check_branch
      %19 = sbr.rel (0) target = $region9
    $region8: #{tpu_custom_call.1} parent=1 // pred_region
      %21 = vsyncadd [#allocation7], 0
      %s23 = sshll.u32 %s1, 4
      %s24 = int_to_ptr.vmem [resolvable:$true] %s23
      %26 = dma.vmem_to_smem %s24, 128, [#allocation4], [#allocation7]
    $region9: #{tpu_custom_call.1} parent=1 // pred_fallthru
      _
    // Predicated region
    $region10: #{tpu_custom_call.1} parent=1 // pred_check
      _
    $region11: #{tpu_custom_call.1} parent=1 // pred_check_branch
      %28 = sbr.rel (0) target = $region13
    $region12: #{tpu_custom_call.1} parent=1 // pred_region
      %30 = vsyncadd [#allocation5], 0
      %s31 = sshll.u32 %s2, 4
      %s32 = int_to_ptr.hbm [resolvable:$true] %s31
      %s33 = sshll.u32 [#allocation8], 4
      %s34 = int_to_ptr.vmem [resolvable:$true] %s33
      %39 = dma.hbm_to_vmem [thread:$0]  %s32, 1024, %s34, [#allocation5], 128, 128, 8
    $region13: #{tpu_custom_call.1} parent=1 // pred_fallthru
      _
    // Predicated region
    $region14: #{tpu_custom_call.1} parent=1 // pred_check
      _
    $region15: #{tpu_custom_call.1} parent=1 // pred_check_branch
      %41 = sbr.rel (0) target = $region17
    $region16: #{tpu_custom_call.1} parent=1 // pred_region
      %43 = vsyncadd [#allocation10], 0
      %s44 = sshll.u32 %s3, 4
      %s45 = int_to_ptr.hbm [resolvable:$true] %s44
      %s46 = sshll.u32 [#allocation9], 4
      %s47 = int_to_ptr.vmem [resolvable:$true] %s46
      %52 = dma.hbm_to_vmem [thread:$0]  %s45, 2048, %s47, [#allocation10], 128, 128, 8
    $region17: #{tpu_custom_call.1} parent=1 // pred_fallthru
      _
    // Predicated region
    $region18: #{tpu_custom_call.1} parent=1 // pred_check
      _
    $region19: #{tpu_custom_call.1} parent=1 // pred_check_branch
      %54 = sbr.rel (0) target = $region21
    $region20: #{tpu_custom_call.1} parent=1 // pred_region
      %56 = vsyncadd [#allocation10], 0
      %s57 = sshll.u32 %s4, 4
      %s58 = int_to_ptr.hbm [resolvable:$true] %s57
      %s59 = sshll.u32 [#allocation11], 4
      %s60 = int_to_ptr.vmem [resolvable:$true] %s59
      %65 = dma.hbm_to_vmem [thread:$0]  %s58, 2048, %s60, [#allocation10], 128, 128, 8
    $region21: #{tpu_custom_call.1} parent=1 // pred_fallthru
      _
    // Predicated region
    $region22: #{tpu_custom_call.1} parent=1 // pred_check
      _
    $region23: #{tpu_custom_call.1} parent=1 // pred_check_branch
      %67 = sbr.rel (0) target = $region25
    $region24: #{tpu_custom_call.1} parent=1 // pred_region
      _
    $region25: #{tpu_custom_call.1} parent=1 // pred_fallthru
      _
    // Predicated region
    $region26: #{tpu_custom_call.1} parent=1 // pred_check
      _
    $region27: #{tpu_custom_call.1} parent=1 // pred_check_branch
      %69 = sbr.rel (0) target = $region29
    $region28: #{tpu_custom_call.1} parent=1 // pred_region
      %71 = dma.done [#allocation7], 128
    $region29: #{tpu_custom_call.1} parent=1 // pred_fallthru
      _
    // Predicated region
    $region30: #{tpu_custom_call.1} parent=1 // pred_check
      _
    $region31: #{tpu_custom_call.1} parent=1 // pred_check_branch
      %73 = sbr.rel (0) target = $region33
    $region32: #{tpu_custom_call.1} parent=1 // pred_region
      %75 = dma.done [#allocation5], 1024
    $region33: #{tpu_custom_call.1} parent=1 // pred_fallthru
      _
    // Predicated region
    $region34: #{tpu_custom_call.1} parent=1 // pred_check
      _
    $region35: #{tpu_custom_call.1} parent=1 // pred_check_branch
      %77 = sbr.rel (0) target = $region37
    $region36: #{tpu_custom_call.1} parent=1 // pred_region
      %79 = dma.done [#allocation10], 2048
    $region37: #{tpu_custom_call.1} parent=1 // pred_fallthru
      _
    // Predicated region
    $region38: #{tpu_custom_call.1} parent=1 // pred_check
      _
    $region39: #{tpu_custom_call.1} parent=1 // pred_check_branch
      %81 = sbr.rel (0) target = $region41
    $region40: #{tpu_custom_call.1} parent=1 // pred_region
      %83 = dma.done [#allocation10], 2048
    $region41: #{tpu_custom_call.1} parent=1 // pred_fallthru
      _
    %84 = sfence
    %s85 = sld [smem:[#allocation3]]
    %86 = vst [vmem:[#allocation2] sm:$0xff] 0.0
    %87 = vst [vmem:[#allocation2 + $0x8] sm:$0xff] 0.0
    %88 = vst [vmem:[#allocation2 + $0x10] sm:$0xff] 0.0
    %89 = vst [vmem:[#allocation2 + $0x18] sm:$0xff] 0.0
    %90 = vst [vmem:[#allocation2 + $0x20] sm:$0xff] 0.0
    %91 = vst [vmem:[#allocation2 + $0x28] sm:$0xff] 0.0
    %92 = vst [vmem:[#allocation2 + $0x30] sm:$0xff] 0.0
    %93 = vst [vmem:[#allocation2 + $0x38] sm:$0xff] 0.0
    %s94 = sld [smem:[#allocation4]]
    %s95 = scalar_lea.vmem [#allocation8], %s94
    %v96 = vld [vmem:[%s95] sm:$0x1]
    %97 = vst [vmem:[#allocation2] sm:$0x1] %v96
    %s98 = sld [smem:[#allocation4 + $0x1]]
    %s99 = scalar_lea.vmem [#allocation8], %s98
    %v100 = vld [vmem:[%s99] sm:$0x1]
    %101 = vst [vmem:[#allocation2 + $0x1] sm:$0x1] %v100
    %s102 = sld [smem:[#allocation4 + $0x80]]
    %s103 = scalar_lea.vmem [#allocation8], %s102
    %v104 = vld [vmem:[%s103] sm:$0x1]
    %105 = vst [vmem:[#allocation2 + $0x8] sm:$0x1] %v104
    %s106 = sld [smem:[#allocation4 + $0x81]]
    %s107 = scalar_lea.vmem [#allocation8], %s106
    %v108 = vld [vmem:[%s107] sm:$0x1]
    %109 = vst [vmem:[#allocation2 + $0x9] sm:$0x1] %v108
    %s110 = sld [smem:[#allocation4 + $0x100]]
    %s111 = scalar_lea.vmem [#allocation8], %s110
    %v112 = vld [vmem:[%s111] sm:$0x1]
    %113 = vst [vmem:[#allocation2 + $0x10] sm:$0x1] %v112
    %s114 = sld [smem:[#allocation4 + $0x101]]
    %s115 = scalar_lea.vmem [#allocation8], %s114
    %v116 = vld [vmem:[%s115] sm:$0x1]
    %117 = vst [vmem:[#allocation2 + $0x11] sm:$0x1] %v116
    %s118 = sld [smem:[#allocation4 + $0x180]]
    %s119 = scalar_lea.vmem [#allocation8], %s118
    %v120 = vld [vmem:[%s119] sm:$0x1]
    %121 = vst [vmem:[#allocation2 + $0x18] sm:$0x1] %v120
    %s122 = sld [smem:[#allocation4 + $0x181]]
    %s123 = scalar_lea.vmem [#allocation8], %s122
    %v124 = vld [vmem:[%s123] sm:$0x1]
    %125 = vst [vmem:[#allocation2 + $0x19] sm:$0x1] %v124
    %s126 = sld [smem:[#allocation4 + $0x200]]
    %s127 = scalar_lea.vmem [#allocation8], %s126
    %v128 = vld [vmem:[%s127] sm:$0x1]
    %129 = vst [vmem:[#allocation2 + $0x20] sm:$0x1] %v128
    %s130 = sld [smem:[#allocation4 + $0x201]]
    %s131 = scalar_lea.vmem [#allocation8], %s130
    %v132 = vld [vmem:[%s131] sm:$0x1]
    %133 = vst [vmem:[#allocation2 + $0x21] sm:$0x1] %v132
    %s134 = sld [smem:[#allocation4 + $0x280]]
    %s135 = scalar_lea.vmem [#allocation8], %s134
    %v136 = vld [vmem:[%s135] sm:$0x1]
    %137 = vst [vmem:[#allocation2 + $0x28] sm:$0x1] %v136
    %s138 = sld [smem:[#allocation4 + $0x281]]
    %s139 = scalar_lea.vmem [#allocation8], %s138
    %v140 = vld [vmem:[%s139] sm:$0x1]
    %141 = vst [vmem:[#allocation2 + $0x29] sm:$0x1] %v140
    %s142 = sld [smem:[#allocation4 + $0x300]]
    %s143 = scalar_lea.vmem [#allocation8], %s142
    %v144 = vld [vmem:[%s143] sm:$0x1]
    %145 = vst [vmem:[#allocation2 + $0x30] sm:$0x1] %v144
    %s146 = sld [smem:[#allocation4 + $0x301]]
    %s147 = scalar_lea.vmem [#allocation8], %s146
    %v148 = vld [vmem:[%s147] sm:$0x1]
    %149 = vst [vmem:[#allocation2 + $0x31] sm:$0x1] %v148
    %s150 = sld [smem:[#allocation4 + $0x380]]
    %s151 = scalar_lea.vmem [#allocation8], %s150
    %v152 = vld [vmem:[%s151] sm:$0x1]
    %153 = vst [vmem:[#allocation2 + $0x38] sm:$0x1] %v152
    %s154 = sld [smem:[#allocation4 + $0x381]]
    %s155 = scalar_lea.vmem [#allocation8], %s154
    %v156 = vld [vmem:[%s155] sm:$0x1]
    %157 = vst [vmem:[#allocation2 + $0x39] sm:$0x1] %v156
    %v158 = vld [vmem:[#allocation9] sm:$0xff]
    %v159 = vld [vmem:[#allocation9 + $0x8] sm:$0xff]
    %v160 = vld [vmem:[#allocation9 + $0x10] sm:$0xff]
    %v161 = vld [vmem:[#allocation9 + $0x18] sm:$0xff]
    %v162 = vld [vmem:[#allocation9 + $0x20] sm:$0xff]
    %v163 = vld [vmem:[#allocation9 + $0x28] sm:$0xff]
    %v164 = vld [vmem:[#allocation9 + $0x30] sm:$0xff]
    %v165 = vld [vmem:[#allocation9 + $0x38] sm:$0xff]
    %v166 = vld [vmem:[#allocation9 + $0x40] sm:$0xff]
    %v167 = vld [vmem:[#allocation9 + $0x48] sm:$0xff]
    %v168 = vld [vmem:[#allocation9 + $0x50] sm:$0xff]
    %v169 = vld [vmem:[#allocation9 + $0x58] sm:$0xff]
    %v170 = vld [vmem:[#allocation9 + $0x60] sm:$0xff]
    %v171 = vld [vmem:[#allocation9 + $0x68] sm:$0xff]
    %v172 = vld [vmem:[#allocation9 + $0x70] sm:$0xff]
    %v173 = vld [vmem:[#allocation9 + $0x78] sm:$0xff]
    %v174 = vld [vmem:[#allocation2] sm:$0xff]
    %v175 = vtanh.pop %v174
    %v176 = vld [vmem:[#allocation2 + $0x8] sm:$0xff]
    %177 = vmatpush.msra.mxu0 %v173
    %178 = vmatpush.msra.mxu0 %v172
    %179 = vmatpush.msra.mxu0 %v171
    %180 = vmatpush.msra.mxu0 %v170
    %181 = vmatpush.msra.mxu0 %v169
    %182 = vmatpush.msra.mxu0 %v168
    %183 = vmatpush.msra.mxu0 %v167
    %184 = vmatpush.msra.mxu0 %v166
    %185 = vmatpush.msra.mxu0 %v165
    %186 = vmatpush.msra.mxu0 %v164
    %187 = vmatpush.msra.mxu0 %v163
    %188 = vmatpush.msra.mxu0 %v162
    %189 = vmatpush.msra.mxu0 %v161
    %190 = vmatpush.msra.mxu0 %v160
    %191 = vmatpush.msra.mxu0 %v159
    %192 = vmatpush.msra.mxu0 %v158
    %193 = vmatmul.f32.gmra.mxu0 %v175
    %v194 = vpop.f32.mrf.mxu0
    %v195 = vadd.f32 0.0, %v194
    %196 = vdwg.mxu0
    %v197 = vadd.f32 %v176, %v195
    %v198 = vtanh.pop %v197
    %p199 = scmp.gt.s32.totalorder %s85, 1
    %s200 = scalar_select %p199, 1, 0
    %v201 = vstv %s200
    %vm202 = vcmp.eq.s32.totalorder %v201, 1
    %v203 = vsel %vm202, %v198, %v175
    %v204 = vld [vmem:[#allocation2 + $0x10] sm:$0xff]
    %205 = vmatpush.msra.mxu0 %v173
    %206 = vmatpush.msra.mxu0 %v172
    %207 = vmatpush.msra.mxu0 %v171
    %208 = vmatpush.msra.mxu0 %v170
    %209 = vmatpush.msra.mxu0 %v169
    %210 = vmatpush.msra.mxu0 %v168
    %211 = vmatpush.msra.mxu0 %v167
    %212 = vmatpush.msra.mxu0 %v166
    %213 = vmatpush.msra.mxu0 %v165
    %214 = vmatpush.msra.mxu0 %v164
    %215 = vmatpush.msra.mxu0 %v163
    %216 = vmatpush.msra.mxu0 %v162
    %217 = vmatpush.msra.mxu0 %v161
    %218 = vmatpush.msra.mxu0 %v160
    %219 = vmatpush.msra.mxu0 %v159
    %220 = vmatpush.msra.mxu0 %v158
    %221 = vmatmul.f32.gmra.mxu0 %v203
    %v222 = vpop.f32.mrf.mxu0
    %v223 = vadd.f32 0.0, %v222
    %224 = vdwg.mxu0
    %v225 = vadd.f32 %v204, %v223
    %v226 = vtanh.pop %v225
    %p227 = scmp.gt.s32.totalorder %s85, 2
    %s228 = scalar_select %p227, 1, 0
    %v229 = vstv %s228
    %vm230 = vcmp.eq.s32.totalorder %v229, 1
    %v231 = vsel %vm230, %v226, %v203
    %v232 = vld [vmem:[#allocation2 + $0x18] sm:$0xff]
    %233 = vmatpush.msra.mxu0 %v173
    %234 = vmatpush.msra.mxu0 %v172
    %235 = vmatpush.msra.mxu0 %v171
    %236 = vmatpush.msra.mxu0 %v170
    %237 = vmatpush.msra.mxu0 %v169
    %238 = vmatpush.msra.mxu0 %v168
    %239 = vmatpush.msra.mxu0 %v167
    %240 = vmatpush.msra.mxu0 %v166
    %241 = vmatpush.msra.mxu0 %v165
    %242 = vmatpush.msra.mxu0 %v164
    %243 = vmatpush.msra.mxu0 %v163
    %244 = vmatpush.msra.mxu0 %v162
    %245 = vmatpush.msra.mxu0 %v161
    %246 = vmatpush.msra.mxu0 %v160
    %247 = vmatpush.msra.mxu0 %v159
    %248 = vmatpush.msra.mxu0 %v158
    %249 = vmatmul.f32.gmra.mxu0 %v231
    %v250 = vpop.f32.mrf.mxu0
    %v251 = vadd.f32 0.0, %v250
    %252 = vdwg.mxu0
    %v253 = vadd.f32 %v232, %v251
    %v254 = vtanh.pop %v253
    %p255 = scmp.gt.s32.totalorder %s85, 3
    %s256 = scalar_select %p255, 1, 0
    %v257 = vstv %s256
    %vm258 = vcmp.eq.s32.totalorder %v257, 1
    %v259 = vsel %vm258, %v254, %v231
    %v260 = vld [vmem:[#allocation2 + $0x20] sm:$0xff]
    %261 = vmatpush.msra.mxu0 %v173
    %262 = vmatpush.msra.mxu0 %v172
    %263 = vmatpush.msra.mxu0 %v171
    %264 = vmatpush.msra.mxu0 %v170
    %265 = vmatpush.msra.mxu0 %v169
    %266 = vmatpush.msra.mxu0 %v168
    %267 = vmatpush.msra.mxu0 %v167
    %268 = vmatpush.msra.mxu0 %v166
    %269 = vmatpush.msra.mxu0 %v165
    %270 = vmatpush.msra.mxu0 %v164
    %271 = vmatpush.msra.mxu0 %v163
    %272 = vmatpush.msra.mxu0 %v162
    %273 = vmatpush.msra.mxu0 %v161
    %274 = vmatpush.msra.mxu0 %v160
    %275 = vmatpush.msra.mxu0 %v159
    %276 = vmatpush.msra.mxu0 %v158
    %277 = vmatmul.f32.gmra.mxu0 %v259
    %v278 = vpop.f32.mrf.mxu0
    %v279 = vadd.f32 0.0, %v278
    %280 = vdwg.mxu0
    %v281 = vadd.f32 %v260, %v279
    %v282 = vtanh.pop %v281
    %p283 = scmp.gt.s32.totalorder %s85, 4
    %s284 = scalar_select %p283, 1, 0
    %v285 = vstv %s284
    %vm286 = vcmp.eq.s32.totalorder %v285, 1
    %v287 = vsel %vm286, %v282, %v259
    %v288 = vld [vmem:[#allocation2 + $0x28] sm:$0xff]
    %289 = vmatpush.msra.mxu0 %v173
    %290 = vmatpush.msra.mxu0 %v172
    %291 = vmatpush.msra.mxu0 %v171
    %292 = vmatpush.msra.mxu0 %v170
    %293 = vmatpush.msra.mxu0 %v169
    %294 = vmatpush.msra.mxu0 %v168
    %295 = vmatpush.msra.mxu0 %v167
    %296 = vmatpush.msra.mxu0 %v166
    %297 = vmatpush.msra.mxu0 %v165
    %298 = vmatpush.msra.mxu0 %v164
    %299 = vmatpush.msra.mxu0 %v163
    %300 = vmatpush.msra.mxu0 %v162
    %301 = vmatpush.msra.mxu0 %v161
    %302 = vmatpush.msra.mxu0 %v160
    %303 = vmatpush.msra.mxu0 %v159
    %304 = vmatpush.msra.mxu0 %v158
    %305 = vmatmul.f32.gmra.mxu0 %v287
    %v306 = vpop.f32.mrf.mxu0
    %v307 = vadd.f32 0.0, %v306
    %308 = vdwg.mxu0
    %v309 = vadd.f32 %v288, %v307
    %v310 = vtanh.pop %v309
    %p311 = scmp.gt.s32.totalorder %s85, 5
    %s312 = scalar_select %p311, 1, 0
    %v313 = vstv %s312
    %vm314 = vcmp.eq.s32.totalorder %v313, 1
    %v315 = vsel %vm314, %v310, %v287
    %v316 = vld [vmem:[#allocation2 + $0x30] sm:$0xff]
    %317 = vmatpush.msra.mxu0 %v173
    %318 = vmatpush.msra.mxu0 %v172
    %319 = vmatpush.msra.mxu0 %v171
    %320 = vmatpush.msra.mxu0 %v170
    %321 = vmatpush.msra.mxu0 %v169
    %322 = vmatpush.msra.mxu0 %v168
    %323 = vmatpush.msra.mxu0 %v167
    %324 = vmatpush.msra.mxu0 %v166
    %325 = vmatpush.msra.mxu0 %v165
    %326 = vmatpush.msra.mxu0 %v164
    %327 = vmatpush.msra.mxu0 %v163
    %328 = vmatpush.msra.mxu0 %v162
    %329 = vmatpush.msra.mxu0 %v161
    %330 = vmatpush.msra.mxu0 %v160
    %331 = vmatpush.msra.mxu0 %v159
    %332 = vmatpush.msra.mxu0 %v158
    %333 = vmatmul.f32.gmra.mxu0 %v315
    %v334 = vpop.f32.mrf.mxu0
    %v335 = vadd.f32 0.0, %v334
    %336 = vdwg.mxu0
    %v337 = vadd.f32 %v316, %v335
    %v338 = vtanh.pop %v337
    %p339 = scmp.gt.s32.totalorder %s85, 6
    %s340 = scalar_select %p339, 1, 0
    %v341 = vstv %s340
    %vm342 = vcmp.eq.s32.totalorder %v341, 1
    %v343 = vsel %vm342, %v338, %v315
    %v344 = vld [vmem:[#allocation2 + $0x38] sm:$0xff]
    %345 = vmatpush.msra.mxu0 %v173
    %346 = vmatpush.msra.mxu0 %v172
    %347 = vmatpush.msra.mxu0 %v171
    %348 = vmatpush.msra.mxu0 %v170
    %349 = vmatpush.msra.mxu0 %v169
    %350 = vmatpush.msra.mxu0 %v168
    %351 = vmatpush.msra.mxu0 %v167
    %352 = vmatpush.msra.mxu0 %v166
    %353 = vmatpush.msra.mxu0 %v165
    %354 = vmatpush.msra.mxu0 %v164
    %355 = vmatpush.msra.mxu0 %v163
    %356 = vmatpush.msra.mxu0 %v162
    %357 = vmatpush.msra.mxu0 %v161
    %358 = vmatpush.msra.mxu0 %v160
    %359 = vmatpush.msra.mxu0 %v159
    %360 = vmatpush.msra.mxu0 %v158
    %361 = vmatmul.f32.gmra.mxu0 %v343
    %v362 = vpop.f32.mrf.mxu0
    %v363 = vadd.f32 0.0, %v362
    %364 = vdwg.mxu0
    %v365 = vadd.f32 %v344, %v363
    %v366 = vtanh.pop %v365
    %p367 = scmp.gt.s32.totalorder %s85, 7
    %s368 = scalar_select %p367, 1, 0
    %v369 = vstv %s368
    %vm370 = vcmp.eq.s32.totalorder %v369, 1
    %v371 = vsel %vm370, %v366, %v343
    %v372 = vld [vmem:[#allocation11] sm:$0xff]
    %v373 = vld [vmem:[#allocation11 + $0x8] sm:$0xff]
    %v374 = vld [vmem:[#allocation11 + $0x10] sm:$0xff]
    %v375 = vld [vmem:[#allocation11 + $0x18] sm:$0xff]
    %v376 = vld [vmem:[#allocation11 + $0x20] sm:$0xff]
    %v377 = vld [vmem:[#allocation11 + $0x28] sm:$0xff]
    %v378 = vld [vmem:[#allocation11 + $0x30] sm:$0xff]
    %v379 = vld [vmem:[#allocation11 + $0x38] sm:$0xff]
    %v380 = vld [vmem:[#allocation11 + $0x40] sm:$0xff]
    %v381 = vld [vmem:[#allocation11 + $0x48] sm:$0xff]
    %v382 = vld [vmem:[#allocation11 + $0x50] sm:$0xff]
    %v383 = vld [vmem:[#allocation11 + $0x58] sm:$0xff]
    %v384 = vld [vmem:[#allocation11 + $0x60] sm:$0xff]
    %v385 = vld [vmem:[#allocation11 + $0x68] sm:$0xff]
    %v386 = vld [vmem:[#allocation11 + $0x70] sm:$0xff]
    %v387 = vld [vmem:[#allocation11 + $0x78] sm:$0xff]
    %v388 = vld [vmem:[%s5] sm:$0x1]
    %v390 = vperm.slane %v388, 0
    %392 = vmatpush.msra.mxu0 %v387
    %393 = vmatpush.msra.mxu0 %v386
    %394 = vmatpush.msra.mxu0 %v385
    %395 = vmatpush.msra.mxu0 %v384
    %396 = vmatpush.msra.mxu0 %v383
    %397 = vmatpush.msra.mxu0 %v382
    %398 = vmatpush.msra.mxu0 %v381
    %399 = vmatpush.msra.mxu0 %v380
    %400 = vmatpush.msra.mxu0 %v379
    %401 = vmatpush.msra.mxu0 %v378
    %402 = vmatpush.msra.mxu0 %v377
    %403 = vmatpush.msra.mxu0 %v376
    %404 = vmatpush.msra.mxu0 %v375
    %405 = vmatpush.msra.mxu0 %v374
    %406 = vmatpush.msra.mxu0 %v373
    %407 = vmatpush.msra.mxu0 %v372
    %408 = vmatmul.f32.gmra.mxu0 %v371
    %v409 = vpop.f32.mrf.mxu0
    %v410 = vadd.f32 %v390, %v409
    %411 = vdwg.mxu0
    %412 = vmax.xlane.f32.xlu0 %v410
    %v413 = vpop.xlane.xlu0 %412
    %v414 = vsub.f32 %v410, %v413
    %v415 = vmul.f32 %v414, 1.442695
    %v416 = vpow.pop %v415
    %417 = vadd.xlane.f32.xlu0 %v416
    %v418 = vpop.xlane.xlu0 %417
    %v419 = vlog2.pop %v418
    %v420 = vmul.f32 %v419, 0.6931472
    %v421 = vadd.f32 %v420, %v413
    %v422 = vsub.f32 %v410, %v421
    %423 = vst [vmem:[#allocation12] sm:$0xff] %v422
    // Predicated region
    $region42: #{tpu_custom_call.1} parent=1 // pred_check
      _
    $region43: #{tpu_custom_call.1} parent=1 // pred_check_branch
      %425 = sbr.rel (0) target = $region45
    $region44: #{tpu_custom_call.1} parent=1 // pred_region
      %427 = vsyncadd [#allocation6], 0
      %s429 = sshll.u32 [#allocation12], 4
      %s430 = int_to_ptr.vmem [resolvable:$true] %s429
      %s431 = sshll.u32 %s6, 4
      %s432 = int_to_ptr.hbm [resolvable:$true] %s431
      %434 = dma.vmem_to_hbm [thread:$0]  %s430, 128, %s432, [#allocation6]
    $region45: #{tpu_custom_call.1} parent=1 // pred_fallthru
      _
    // Predicated region
    $region46: #{tpu_custom_call.1} parent=1 // pred_check
      _
    $region47: #{tpu_custom_call.1} parent=1 // pred_check_branch
      %436 = sbr.rel (0) target = $region49
    $region48: #{tpu_custom_call.1} parent=1 // pred_region
      %438 = dma.done [#allocation6], 128
    $region49: #{tpu_custom_call.1} parent=1 // pred_fallthru
      _
    %439 = vsyncpa [#allocation5], 1
    %440 = vsyncpa [#allocation10], 1
    %441 = vsyncpa [#allocation6], 1
    %442 = vsyncpa [#allocation7], 1

</llo_original>
